<compile_context>
chip_gen: v5e
topology: v5e:2x2
jax: 0.10.0
libtpu: 0.0.40
codegen_flags: <defaults>
</compile_context>

<pallas_src>
import math
import functools

import jax
import jax.numpy as jnp
from jax.experimental import pallas as pl
from jax.experimental.pallas import tpu as pltpu


# --------------------------------------------------------------------------- #
# Kernel: per (batch, q_tile, head) grid step.
#   * h == 0        : seed the (tq, H) f32 accumulator with the residual half
#                     of the final linear (precomputed in the wrapper).
#   * every step    : scores -> exact softmax -> store attn tile -> accumulate
#                     P @ V'_h into the accumulator.
#   * h == last     : ReLU, residual add, LayerNorm, write the output tile.
# --------------------------------------------------------------------------- #
def _attention_kernel(eps,
                      q_ref, kt_ref, vp_ref, reslin_ref, resid_ref,
                      gamma_ref, beta_ref,
                      out_ref, attn_ref,
                      acc_sc):
    h_idx = pl.program_id(2)
    last_h = pl.num_programs(2) - 1

    d = q_ref.shape[-1]                       # head dim (static)
    scale = 1.0 / math.sqrt(d)

    # ---- first head of this (batch, q tile): seed accumulator with residual half ----
    @pl.when(h_idx == 0)
    def _():
        acc_sc[...] = reslin_ref[0]

    # ---- scores: plain (tq, d) x (d, S) MXU matmul (K already in (d, S) layout) ----
    s = jnp.dot(q_ref[0, 0], kt_ref[0, 0],
                preferred_element_type=jnp.float32) * scale                    # (tq, S)
    # TODO(synk): optional `mask` argument of the PyTorch forward is not supported here.
    m = jnp.max(s, axis=-1, keepdims=True)
    p = jnp.exp(s - m)
    p = p / jnp.sum(p, axis=-1, keepdims=True)        # exact softmax (returned to caller)
    # attn_dropout: identity in eval mode
    attn_ref[0, 0] = p.astype(attn_ref.dtype)         # one lane-dense full-block store

    # ---- accumulate this head's contribution to the final linear (lane-dense N=H) ----
    acc_sc[...] += jnp.dot(p, vp_ref[0, 0], preferred_element_type=jnp.float32)

    # ---- last head: ReLU, residual add, LayerNorm, write output tile ----
    @pl.when(h_idx == last_h)
    def _():
        final = jnp.maximum(acc_sc[...], 0.0)
        # residual_dropout: identity in eval mode
        final = final + resid_ref[0].astype(jnp.float32)
        mean = jnp.mean(final, axis=-1, keepdims=True)
        var = jnp.mean((final - mean) ** 2, axis=-1, keepdims=True)
        normed = (final - mean) * jax.lax.rsqrt(var + eps)
        out_ref[0] = (normed * gamma_ref[...] + beta_ref[...]).astype(out_ref.dtype)


# --------------------------------------------------------------------------- #
# Wrapper helpers
# --------------------------------------------------------------------------- #
def _vmem_limit_bytes():
    """Per-generation VMEM budget with headroom (v7x: 64 MiB phys -> 48 MiB;
    v5e/v6e: 128 MiB -> 96 MiB)."""
    default_cap = 64 * 1024 * 1024
    try:
        cap = int(pltpu.get_tpu_info().vmem_capacity_bytes)
    except Exception:            # non-TPU host / older jax: conservative fallback
        cap = default_cap
    return max(32 * 1024 * 1024, (cap * 3) // 4)


def _pick_q_tile(S, H, q_block, vmem_limit):
    """Largest multiple-of-8 divisor of S that is <= q_block and whose
    double-buffered per-step blocks stay well inside the VMEM budget."""
    cands = [t for t in range(8, S + 1, 8) if S % t == 0] or [S]

    def step_bytes(t):           # rough f32, double-buffered working set
        return 8 * (t * S + 3 * t * H + S * H + t * 128)

    ok = [t for t in cands if t <= q_block and step_bytes(t) <= vmem_limit // 2]
    if ok:
        return ok[-1]
    # TODO(synk): for huge S with no fitting divisor, pad S / stream K instead.
    return cands[0]


# --------------------------------------------------------------------------- #
# Forward
# --------------------------------------------------------------------------- #
def attention_forward(key, value, query, params, *, num_heads=4, eps=1e-5,
                      q_block=512, attn_dtype=jnp.float32):
    """Pallas forward of Attention. key/value/query: (B, S, H) float32.

    Returns (out (B,S,H), attns (B,heads,S,S)).  `attn_dtype=jnp.bfloat16`
    halves the dominant S^2 HBM write if the caller does not need f32 attns.
    """
    B, S, H = key.shape
    assert H % num_heads == 0, "num_hidden must be divisible by num heads"
    d = H // num_heads

    wk, wv, wq, wf = params["wk"], params["wv"], params["wq"], params["wf"]
    bf = params["bf"]
    gamma2 = params["gamma"].reshape(1, H).astype(jnp.float32)
    beta2 = params["beta"].reshape(1, H).astype(jnp.float32)

    f32 = jnp.float32
    keyf, valf, qryf = key.astype(f32), value.astype(f32), query.astype(f32)

    # ---- Hoisted projections: full-rate XLA (S,H)x(H,H) matmuls ------------- #
    q_heads = (qryf @ wq.T).reshape(B, S, num_heads, d).transpose(0, 2, 1, 3)   # (B,h,S,d)
    k_heads_t = (keyf @ wk.T).reshape(B, S, num_heads, d).transpose(0, 2, 3, 1)  # (B,h,d,S)
    v_heads = (valf @ wv.T).reshape(B, S, num_heads, d).transpose(0, 2, 1, 3)   # (B,h,S,d)

    # Reassociated final linear: attn @ (V_h @ Wf_attn_h) — precompute V'_h once.
    wf_attn_heads = wf[:, H:].T.reshape(num_heads, d, H)                         # (h,d,H)
    vprime = jnp.einsum("bhsd,hdn->bhsn", v_heads, wf_attn_heads)               # (B,h,S,H)
    # Residual half of the final linear (+ bias), computed once per batch in XLA.
    res_lin = valf @ wf[:, :H].T + bf.reshape(1, 1, H)                           # (B,S,H)

    vmem_limit = _vmem_limit_bytes()
    tq = _pick_q_tile(S, H, q_block, vmem_limit)
    nq = S // tq if S % tq == 0 else 1

    kernel = functools.partial(_attention_kernel, eps)

    out, attns = pl.pallas_call(
        kernel,
        out_shape=(
            jax.ShapeDtypeStruct((B, S, H), key.dtype),
            jax.ShapeDtypeStruct((B, num_heads, S, S), attn_dtype),
        ),
        grid_spec=pltpu.PrefetchScalarGridSpec(
            num_scalar_prefetch=0,
            grid=(B, nq, num_heads),
            in_specs=[
                pl.BlockSpec((1, 1, tq, d), lambda b, qi, h: (b, h, qi, 0)),   # Q head tile
                pl.BlockSpec((1, 1, d, S), lambda b, qi, h: (b, h, 0, 0)),     # K^T per head (d,S)
                pl.BlockSpec((1, 1, S, H), lambda b, qi, h: (b, h, 0, 0)),     # V' per head (S,H)
                pl.BlockSpec((1, tq, H), lambda b, qi, h: (b, qi, 0)),         # residual-linear tile
                pl.BlockSpec((1, tq, H), lambda b, qi, h: (b, qi, 0)),         # residual (value) tile
                pl.BlockSpec((1, H), lambda b, qi, h: (0, 0)),                 # layernorm gamma
                pl.BlockSpec((1, H), lambda b, qi, h: (0, 0)),                 # layernorm beta
            ],
            out_specs=[
                pl.BlockSpec((1, tq, H), lambda b, qi, h: (b, qi, 0)),         # output tile
                pl.BlockSpec((1, 1, tq, S), lambda b, qi, h: (b, h, qi, 0)),   # attn tile
            ],
            scratch_shapes=[
                pltpu.VMEM((tq, H), jnp.float32),      # final-linear accumulator
            ],
        ),
        compiler_params=pltpu.CompilerParams(
            # batch and q-tile axes are independent (megacore-shardable); only the
            # head axis carries the accumulator dependence.
            dimension_semantics=("parallel", "parallel", "arbitrary"),
            vmem_limit_bytes=vmem_limit,
        ),
    )(q_heads, k_heads_t, vprime, res_lin, valf, gamma2, beta2)
    return out, attns


# --------------------------------------------------------------------------- #
# Params / reference / check
# --------------------------------------------------------------------------- #
def init_params(rng, num_hidden):
    """Deterministic xavier-uniform-style init (gain=1 for 'linear')."""
    def xavier(key, out_dim, in_dim):
        bound = math.sqrt(6.0 / (in_dim + out_dim))
        return jax.random.uniform(key, (out_dim, in_dim), jnp.float32, -bound, bound)

    k1, k2, k3, k4 = jax.random.split(rng, 4)
    H = num_hidden
    return {
        "wk": xavier(k1, H, H),
        "wv": xavier(k2, H, H),
        "wq": xavier(k3, H, H),
        "wf": xavier(k4, H, 2 * H),
        "bf": jnp.zeros((H,), jnp.float32),
        "gamma": jnp.ones((H,), jnp.float32),
        "beta": jnp.zeros((H,), jnp.float32),
    }


def reference_forward(key, value, query, params, *, num_heads=4, eps=1e-5):
    """Pure-JAX reference mirroring the PyTorch forward (eval mode)."""
    B, S, H = key.shape
    d = H // num_heads
    residual = value
    k = key @ params["wk"].T
    v = value @ params["wv"].T
    q = query @ params["wq"].T
    k = k.reshape(B, S, num_heads, d).transpose(0, 2, 1, 3)
    v = v.reshape(B, S, num_heads, d).transpose(0, 2, 1, 3)
    q = q.reshape(B, S, num_heads, d).transpose(0, 2, 1, 3)
    attn = jnp.einsum("bhqd,bhkd->bhqk", q, k) / math.sqrt(d)
    attn = jax.nn.softmax(attn, axis=-1)
    res = jnp.einsum("bhqk,bhkd->bhqd", attn, v)
    res = res.transpose(0, 2, 1, 3).reshape(B, S, H)
    cat = jnp.concatenate([residual, res], axis=-1)
    final = jax.nn.relu(cat @ params["wf"].T + params["bf"])
    final = final + residual
    mean = jnp.mean(final, axis=-1, keepdims=True)
    var = jnp.mean((final - mean) ** 2, axis=-1, keepdims=True)
    out = (final - mean) / jnp.sqrt(var + eps) * params["gamma"] + params["beta"]
    return out, attn


def _check(B, S, H, num_heads, seed, q_block=512):
    root = jax.random.PRNGKey(seed)
    kp, kk, kv, kq = jax.random.split(root, 4)
    params = init_params(kp, H)
    key = jax.random.normal(kk, (B, S, H), jnp.float32)
    value = jax.random.normal(kv, (B, S, H), jnp.float32)
    query = jax.random.normal(kq, (B, S, H), jnp.float32)

    out, attns = attention_forward(key, value, query, params,
                                   num_heads=num_heads, q_block=q_block)
    out = jax.block_until_ready(out)
    attns = jax.block_until_ready(attns)

    ref_out, ref_attn = reference_forward(key, value, query, params, num_heads=num_heads)
    assert jnp.allclose(attns, ref_attn, atol=1e-3, rtol=1e-3), "attn mismatch"
    assert jnp.allclose(out, ref_out, atol=2e-3, rtol=2e-3), "output mismatch"


if __name__ == "__main__":
    # Small demo shape (matches the module's typical use).
    _check(B=2, S=8, H=32, num_heads=4, seed=0)
    # Larger sequence with q_block=128 to exercise the multi-q-tile path.
    _check(B=2, S=256, H=32, num_heads=4, seed=0, q_block=128)
    print("KERNEL_OK")
</pallas_src>

<mosaic_0001>
module attributes {stable_mosaic.version = 11 : i64} {
  func.func @_attention_kernel(%arg0: i32, %arg1: i32, %arg2: i32, %arg3: memref<1x1x8x8xf32, #tpu.memory_space<vmem>>, %arg4: memref<1x1x8x8xf32, #tpu.memory_space<vmem>>, %arg5: memref<1x1x8x32xf32, #tpu.memory_space<vmem>>, %arg6: memref<1x8x32xf32, #tpu.memory_space<vmem>>, %arg7: memref<1x8x32xf32, #tpu.memory_space<vmem>>, %arg8: memref<1x32xf32, #tpu.memory_space<vmem>>, %arg9: memref<1x32xf32, #tpu.memory_space<vmem>>, %arg10: memref<1x8x32xf32, #tpu.memory_space<vmem>>, %arg11: memref<1x1x8x8xf32, #tpu.memory_space<vmem>>, %arg12: memref<8x32xf32, #tpu.memory_space<vmem>>) attributes {dimension_semantics = [#tpu.dimension_semantics<parallel>, #tpu.dimension_semantics<parallel>, #tpu.dimension_semantics<arbitrary>], iteration_bounds = array<i64: 2, 1, 4>, scalar_prefetch = 0 : i64, scratch_operands = 1 : i64, tpu.core_type = #tpu.core_type<tc>, window_params = [{transform_indices = @transform_0, window_bounds = array<i64: 1, 1, 8, 8>}, {transform_indices = @transform_1, window_bounds = array<i64: 1, 1, 8, 8>}, {transform_indices = @transform_2, window_bounds = array<i64: 1, 1, 8, 32>}, {transform_indices = @transform_3, window_bounds = array<i64: 1, 8, 32>}, {transform_indices = @transform_4, window_bounds = array<i64: 1, 8, 32>}, {pipeline_mode = #tpu.pipeline_mode<synchronous>, transform_indices = @transform_5, window_bounds = array<i64: 1, 32>}, {pipeline_mode = #tpu.pipeline_mode<synchronous>, transform_indices = @transform_6, window_bounds = array<i64: 1, 32>}, {transform_indices = @transform_7, window_bounds = array<i64: 1, 8, 32>}, {transform_indices = @transform_8, window_bounds = array<i64: 1, 1, 8, 8>}]} {
    %c0_i32 = arith.constant 0 : i32
    %0 = arith.cmpi eq, %arg2, %c0_i32 : i32
    %1 = arith.extui %0 : i1 to i32
    %c0_i32_0 = arith.constant 0 : i32
    %2 = arith.cmpi ne, %1, %c0_i32_0 : i32
    scf.if %2 {
      %c0_25 = arith.constant 0 : index
      %c0_26 = arith.constant 0 : index
      %c0_27 = arith.constant 0 : index
      %31 = vector.load %arg6[%c0_25, %c0_26, %c0_27] : memref<1x8x32xf32, #tpu.memory_space<vmem>>, vector<1x8x32xf32>
      %32 = vector.shape_cast %31 : vector<1x8x32xf32> to vector<8x32xf32>
      %c0_28 = arith.constant 0 : index
      %c0_29 = arith.constant 0 : index
      %33 = vector.load %arg12[%c0_28, %c0_29] : memref<8x32xf32, #tpu.memory_space<vmem>>, vector<8x32xf32>
      tpu.vector_store %arg12[%c0_28, %c0_29], %32 {strides = array<i32>} : memref<8x32xf32, #tpu.memory_space<vmem>>, vector<8x32xf32>,
    } else {
    }
    %c0 = arith.constant 0 : index
    %c0_1 = arith.constant 0 : index
    %c0_2 = arith.constant 0 : index
    %c0_3 = arith.constant 0 : index
    %3 = vector.load %arg3[%c0, %c0_1, %c0_2, %c0_3] : memref<1x1x8x8xf32, #tpu.memory_space<vmem>>, vector<1x1x8x8xf32>
    %4 = vector.shape_cast %3 : vector<1x1x8x8xf32> to vector<8x8xf32>
    %c0_4 = arith.constant 0 : index
    %c0_5 = arith.constant 0 : index
    %c0_6 = arith.constant 0 : index
    %c0_7 = arith.constant 0 : index
    %5 = vector.load %arg4[%c0_4, %c0_5, %c0_6, %c0_7] : memref<1x1x8x8xf32, #tpu.memory_space<vmem>>, vector<1x1x8x8xf32>
    %6 = vector.shape_cast %5 : vector<1x1x8x8xf32> to vector<8x8xf32>
    %cst = arith.constant dense<0.000000e+00> : vector<8x8xf32>
    %7 = tpu.matmul %4, %6, %cst {dimension_numbers = #tpu.dot_dimension_numbers<[1], [0], [0], [1], [0, 0, 1, 1], [], []>} : vector<8x8xf32>, vector<8x8xf32>, vector<8x8xf32> -> vector<8x8xf32>
    %cst_8 = arith.constant 0.353553385 : f32
    %8 = vector.broadcast %cst_8 : f32 to vector<8x8xf32>
    %9 = arith.mulf %7, %8 : vector<8x8xf32>
    %cst_9 = arith.constant dense<0xFF800000> : vector<8xf32>
    %10 = vector.multi_reduction <maximumf>, %9, %cst_9 [1] : vector<8x8xf32> to vector<8xf32>
    %11 = vector.shape_cast %10 : vector<8xf32> to vector<8x1xf32>
    %12 = vector.broadcast %11 : vector<8x1xf32> to vector<8x8xf32>
    %13 = arith.subf %9, %12 : vector<8x8xf32>
    %14 = math.exp %13 : vector<8x8xf32>
    %cst_10 = arith.constant dense<0.000000e+00> : vector<8xf32>
    %15 = vector.multi_reduction <add>, %14, %cst_10 [1] : vector<8x8xf32> to vector<8xf32>
    %16 = vector.shape_cast %15 : vector<8xf32> to vector<8x1xf32>
    %17 = vector.broadcast %16 : vector<8x1xf32> to vector<8x8xf32>
    %18 = arith.divf %14, %17 : vector<8x8xf32>
    %c0_11 = arith.constant 0 : index
    %c0_12 = arith.constant 0 : index
    %c0_13 = arith.constant 0 : index
    %c0_14 = arith.constant 0 : index
    %19 = vector.load %arg11[%c0_11, %c0_12, %c0_13, %c0_14] : memref<1x1x8x8xf32, #tpu.memory_space<vmem>>, vector<1x1x8x8xf32>
    %20 = vector.shape_cast %19 : vector<1x1x8x8xf32> to vector<8x8xf32>
    %21 = vector.shape_cast %18 : vector<8x8xf32> to vector<1x1x8x8xf32>
    tpu.vector_store %arg11[%c0_11, %c0_12, %c0_13, %c0_14], %21 {strides = array<i32>} : memref<1x1x8x8xf32, #tpu.memory_space<vmem>>, vector<1x1x8x8xf32>,
    %c0_15 = arith.constant 0 : index
    %c0_16 = arith.constant 0 : index
    %22 = vector.load %arg12[%c0_15, %c0_16] : memref<8x32xf32, #tpu.memory_space<vmem>>, vector<8x32xf32>
    %c0_17 = arith.constant 0 : index
    %c0_18 = arith.constant 0 : index
    %c0_19 = arith.constant 0 : index
    %c0_20 = arith.constant 0 : index
    %23 = vector.load %arg5[%c0_17, %c0_18, %c0_19, %c0_20] : memref<1x1x8x32xf32, #tpu.memory_space<vmem>>, vector<1x1x8x32xf32>
    %24 = vector.shape_cast %23 : vector<1x1x8x32xf32> to vector<8x32xf32>
    %cst_21 = arith.constant dense<0.000000e+00> : vector<8x32xf32>
    %25 = tpu.matmul %18, %24, %cst_21 {dimension_numbers = #tpu.dot_dimension_numbers<[1], [0], [0], [1], [0, 0, 1, 1], [], []>} : vector<8x8xf32>, vector<8x32xf32>, vector<8x32xf32> -> vector<8x32xf32>
    %26 = arith.addf %22, %25 : vector<8x32xf32>
    %c0_22 = arith.constant 0 : index
    %c0_23 = arith.constant 0 : index
    %27 = vector.load %arg12[%c0_22, %c0_23] : memref<8x32xf32, #tpu.memory_space<vmem>>, vector<8x32xf32>
    tpu.vector_store %arg12[%c0_22, %c0_23], %26 {strides = array<i32>} : memref<8x32xf32, #tpu.memory_space<vmem>>, vector<8x32xf32>,
    %c3_i32 = arith.constant 3 : i32
    %28 = arith.cmpi eq, %arg2, %c3_i32 : i32
    %29 = arith.extui %28 : i1 to i32
    %c0_i32_24 = arith.constant 0 : i32
    %30 = arith.cmpi ne, %29, %c0_i32_24 : i32
    scf.if %30 {
      %c0_25 = arith.constant 0 : index
      %c0_26 = arith.constant 0 : index
      %31 = vector.load %arg12[%c0_25, %c0_26] : memref<8x32xf32, #tpu.memory_space<vmem>>, vector<8x32xf32>
      %cst_27 = arith.constant 0.000000e+00 : f32
      %32 = vector.broadcast %cst_27 : f32 to vector<8x32xf32>
      %33 = arith.maximumf %31, %32 : vector<8x32xf32>
      %c0_28 = arith.constant 0 : index
      %c0_29 = arith.constant 0 : index
      %c0_30 = arith.constant 0 : index
      %34 = vector.load %arg7[%c0_28, %c0_29, %c0_30] : memref<1x8x32xf32, #tpu.memory_space<vmem>>, vector<1x8x32xf32>
      %35 = vector.shape_cast %34 : vector<1x8x32xf32> to vector<8x32xf32>
      %36 = arith.addf %33, %35 : vector<8x32xf32>
      %cst_31 = arith.constant dense<0.000000e+00> : vector<8xf32>
      %37 = vector.multi_reduction <add>, %36, %cst_31 [1] : vector<8x32xf32> to vector<8xf32>
      %38 = vector.shape_cast %37 : vector<8xf32> to vector<8x1xf32>
      %cst_32 = arith.constant 3.200000e+01 : f32
      %39 = vector.broadcast %cst_32 : f32 to vector<8x1xf32>
      %40 = arith.divf %38, %39 : vector<8x1xf32>
      %41 = vector.broadcast %40 : vector<8x1xf32> to vector<8x32xf32>
      %42 = arith.subf %36, %41 : vector<8x32xf32>
      %43 = arith.mulf %42, %42 : vector<8x32xf32>
      %cst_33 = arith.constant dense<0.000000e+00> : vector<8xf32>
      %44 = vector.multi_reduction <add>, %43, %cst_33 [1] : vector<8x32xf32> to vector<8xf32>
      %45 = vector.shape_cast %44 : vector<8xf32> to vector<8x1xf32>
      %cst_34 = arith.constant 3.200000e+01 : f32
      %46 = vector.broadcast %cst_34 : f32 to vector<8x1xf32>
      %47 = arith.divf %45, %46 : vector<8x1xf32>
      %48 = vector.broadcast %40 : vector<8x1xf32> to vector<8x32xf32>
      %49 = arith.subf %36, %48 : vector<8x32xf32>
      %cst_35 = arith.constant 9.99999974E-6 : f32
      %50 = vector.broadcast %cst_35 : f32 to vector<8x1xf32>
      %51 = arith.addf %47, %50 : vector<8x1xf32>
      %52 = math.rsqrt %51 : vector<8x1xf32>
      %53 = vector.broadcast %52 : vector<8x1xf32> to vector<8x32xf32>
      %54 = arith.mulf %49, %53 : vector<8x32xf32>
      %c0_36 = arith.constant 0 : index
      %c0_37 = arith.constant 0 : index
      %55 = vector.load %arg8[%c0_36, %c0_37] : memref<1x32xf32, #tpu.memory_space<vmem>>, vector<1x32xf32>
      %56 = vector.broadcast %55 : vector<1x32xf32> to vector<8x32xf32>
      %57 = arith.mulf %54, %56 : vector<8x32xf32>
      %c0_38 = arith.constant 0 : index
      %c0_39 = arith.constant 0 : index
      %58 = vector.load %arg9[%c0_38, %c0_39] : memref<1x32xf32, #tpu.memory_space<vmem>>, vector<1x32xf32>
      %59 = vector.broadcast %58 : vector<1x32xf32> to vector<8x32xf32>
      %60 = arith.addf %57, %59 : vector<8x32xf32>
      %c0_40 = arith.constant 0 : index
      %c0_41 = arith.constant 0 : index
      %c0_42 = arith.constant 0 : index
      %61 = vector.load %arg10[%c0_40, %c0_41, %c0_42] : memref<1x8x32xf32, #tpu.memory_space<vmem>>, vector<1x8x32xf32>
      %62 = vector.shape_cast %61 : vector<1x8x32xf32> to vector<8x32xf32>
      %63 = vector.shape_cast %60 : vector<8x32xf32> to vector<1x8x32xf32>
      tpu.vector_store %arg10[%c0_40, %c0_41, %c0_42], %63 {strides = array<i32>} : memref<1x8x32xf32, #tpu.memory_space<vmem>>, vector<1x8x32xf32>,
    } else {
    }
    return
  }
  func.func @transform_0(%arg0: i32, %arg1: i32, %arg2: i32) -> (i32, i32, i32, i32) {
    %c0_i32 = arith.constant 0 : i32
    %c0_i32_0 = arith.constant 0 : i32
    return %arg0, %arg2, %arg1, %c0_i32 : i32, i32, i32, i32
  }
  func.func @transform_1(%arg0: i32, %arg1: i32, %arg2: i32) -> (i32, i32, i32, i32) {
    %c0_i32 = arith.constant 0 : i32
    %c0_i32_0 = arith.constant 0 : i32
    %c0_i32_1 = arith.constant 0 : i32
    return %arg0, %arg2, %c0_i32, %c0_i32_0 : i32, i32, i32, i32
  }
  func.func @transform_2(%arg0: i32, %arg1: i32, %arg2: i32) -> (i32, i32, i32, i32) {
    %c0_i32 = arith.constant 0 : i32
    %c0_i32_0 = arith.constant 0 : i32
    %c0_i32_1 = arith.constant 0 : i32
    return %arg0, %arg2, %c0_i32, %c0_i32_0 : i32, i32, i32, i32
  }
  func.func @transform_3(%arg0: i32, %arg1: i32, %arg2: i32) -> (i32, i32, i32) {
    %c0_i32 = arith.constant 0 : i32
    %c0_i32_0 = arith.constant 0 : i32
    return %arg0, %arg1, %c0_i32 : i32, i32, i32
  }
  func.func @transform_4(%arg0: i32, %arg1: i32, %arg2: i32) -> (i32, i32, i32) {
    %c0_i32 = arith.constant 0 : i32
    %c0_i32_0 = arith.constant 0 : i32
    return %arg0, %arg1, %c0_i32 : i32, i32, i32
  }
  func.func @transform_5(%arg0: i32, %arg1: i32, %arg2: i32) -> (i32, i32) {
    %c0_i32 = arith.constant 0 : i32
    %c0_i32_0 = arith.constant 0 : i32
    %c0_i32_1 = arith.constant 0 : i32
    return %c0_i32, %c0_i32_0 : i32, i32
  }
  func.func @transform_6(%arg0: i32, %arg1: i32, %arg2: i32) -> (i32, i32) {
    %c0_i32 = arith.constant 0 : i32
    %c0_i32_0 = arith.constant 0 : i32
    %c0_i32_1 = arith.constant 0 : i32
    return %c0_i32, %c0_i32_0 : i32, i32
  }
  func.func @transform_7(%arg0: i32, %arg1: i32, %arg2: i32) -> (i32, i32, i32) {
    %c0_i32 = arith.constant 0 : i32
    %c0_i32_0 = arith.constant 0 : i32
    return %arg0, %arg1, %c0_i32 : i32, i32, i32
  }
  func.func @transform_8(%arg0: i32, %arg1: i32, %arg2: i32) -> (i32, i32, i32, i32) {
    %c0_i32 = arith.constant 0 : i32
    %c0_i32_0 = arith.constant 0 : i32
    return %arg0, %arg2, %arg1, %c0_i32 : i32, i32, i32, i32
  }
}

</mosaic_0001>

<llo_original>
// kernel: tpu_custom_call.1
$region0: #{tpu_custom_call.1}
  #allocation0 [shape = 'u32[]', space=smem, size = 0x4, offset = 0x4, fixed_abs, tag = 'smem constant byte address 0x4 - core index']
  #allocation1 [shape = 'u32[72,128]{1,0:T(1,128)}', space=vmem, size = 0x9000, scoped, tag = 'internal scratch']
  #allocation2 [shape = 'f32[8,32]{1,0:T(8,128)}', space=vmem, size = 0x1000, scoped, tag = 'scratch operand']
  %s0 = inlined_call_operand.hbm [shape: f32[2,4,8,8], index: 0, kind: input, shape index: {}]
  %s1 = inlined_call_operand.hbm [shape: f32[2,4,8,8], index: 1, kind: input, shape index: {}]
  %s2 = inlined_call_operand.hbm [shape: f32[2,4,8,32], index: 2, kind: input, shape index: {}]
  %s3 = inlined_call_operand.hbm [shape: f32[2,8,32], index: 3, kind: input, shape index: {}]
  %s4 = inlined_call_operand.hbm [shape: f32[2,8,32], index: 4, kind: input, shape index: {}]
  %s5 = inlined_call_operand.vmem [shape: f32[1,32], index: 5, kind: input, shape index: {}]
  %s6 = inlined_call_operand.vmem [shape: f32[1,32], index: 6, kind: input, shape index: {}]
  %s7 = inlined_call_operand.hbm [shape: f32[2,8,32], index: 7, kind: output, shape index: {0}]
  %s8 = inlined_call_operand.hbm [shape: f32[2,4,8,8], index: 8, kind: output, shape index: {1}]
  %9 = xla_tuple %s7, %s8
  %s10 = sld [smem:[#allocation0]]
  $region97: #{tpu_custom_call.1} parent=0
    _
  %s12 = ssub.s32 1, %s10
  %s13 = scalar_select 0, %s12, %s10
  $region1: #{tpu_custom_call.1} parent=0
    #allocation3 [shape = 'u8[8192]{0}', space=vmem, size = 0x2000, scoped, tag = 'input window, operand 0']
    #allocation4 [shape = 's32[2]{0}', space=sflag, size = 0x8, scoped, tag = 'scoped memory for tpu_custom_call.1']
    #allocation5 [shape = 's32[2]{0}', space=sflag, size = 0x8, scoped, tag = 'scoped memory for tpu_custom_call.1']
    #allocation6 [shape = 'u8[8192]{0}', space=vmem, size = 0x2000, scoped, tag = 'input window, operand 1']
    #allocation7 [shape = 's32[2]{0}', space=sflag, size = 0x8, scoped, tag = 'scoped memory for tpu_custom_call.1']
    #allocation8 [shape = 'u8[8192]{0}', space=vmem, size = 0x2000, scoped, tag = 'input window, operand 2']
    #allocation9 [shape = 'u8[8192]{0}', space=vmem, size = 0x2000, scoped, tag = 'input window, operand 3']
    #allocation10 [shape = 's32[2]{0}', space=sflag, size = 0x8, scoped, tag = 'scoped memory for tpu_custom_call.1']
    #allocation11 [shape = 'u8[8192]{0}', space=vmem, size = 0x2000, scoped, tag = 'input window, operand 4']
    #allocation12 [shape = 'u8[8192]{0}', space=vmem, size = 0x2000, scoped, tag = 'output window, operand 0']
    #allocation13 [shape = 'u8[8192]{0}', space=vmem, size = 0x2000, scoped, tag = 'output window, operand 1']
    #allocation14 [shape = 's32[2]{0}', space=sflag, size = 0x8, scoped, tag = 'scoped memory for tpu_custom_call.1']
    %14 = vsyncpa [#allocation4], 0
    %s15 = scalar_lea.sflag [#allocation4], 1
    %16 = vsyncpa %s15, 0
    %17 = vsyncpa [#allocation7], 0
    %s18 = scalar_lea.sflag [#allocation7], 1
    %19 = vsyncpa %s18, 0
    %20 = vsyncpa [#allocation10], 0
    %s21 = scalar_lea.sflag [#allocation10], 1
    %22 = vsyncpa %s21, 0
    %23 = vsyncpa [#allocation5], 0
    %s24 = scalar_lea.sflag [#allocation5], 1
    %25 = vsyncpa %s24, 0
    %26 = vsyncpa [#allocation14], 0
    %s27 = scalar_lea.sflag [#allocation14], 1
    %28 = vsyncpa %s27, 0
    loop: start=0, step=1, limit=10
    $region2: #{tpu_custom_call.1} parent=1 // loop_pre_header
      _
    $region3: #{tpu_custom_call.1} parent=1 // loop_header
      %s30 = sphi 0, %s34
      %p31 = scmp.ge.s32.totalorder %s30, 10
      %s37 = sphi 0, %s56
      %s38 = sphi 0, %s52
      %s39 = sphi 0, %s48
      %s40 = sphi 0, %s37
      %s41 = sphi 0, %s38
      %s42 = sphi 0, %s39
      %s43 = sphi 0, %s40
      %s44 = sphi 0, %s41
      %s45 = sphi 0, %s42
      %s63 = sphi 0, %s65
      %s66 = sphi 0, %s63
      %s67 = sphi 0, %s66
      %s83 = sphi 0, %s67
      %s91 = sphi 0, %s93
      %s94 = sphi 0, %s91
      %s95 = sphi 0, %s94
      %s111 = sphi 0, %s95
      %s119 = sphi 0, %s121
      %s122 = sphi 0, %s119
      %s123 = sphi 0, %s122
      %s139 = sphi 0, %s123
      %s147 = sphi 0, %s149
      %s150 = sphi 0, %s147
      %s151 = sphi 0, %s150
      %s167 = sphi 0, %s151
      %s175 = sphi 0, %s177
      %s178 = sphi 0, %s175
      %s179 = sphi 0, %s178
      %s195 = sphi 0, %s179
      %s199 = sphi 0, %s199
      %s201 = sphi 0, %s199
      %s202 = sphi 0, %s201
      %s216 = sphi 0, %s202
      %s220 = sphi 0, %s220
      %s222 = sphi 0, %s220
      %s223 = sphi 0, %s222
      %s237 = sphi 0, %s223
      %s245 = sphi 0, %s247
      %s248 = sphi 0, %s245
      %s249 = sphi 0, %s248
      %s265 = sphi 0, %s249
      %s275 = sphi 0, %s277
      %s278 = sphi 0, %s275
      %s279 = sphi 0, %s278
      %s295 = sphi 0, %s279
    $region4: #{tpu_custom_call.1} parent=1 // loop_header_branch
      %33 = sbr.rel (%p31) target = $region8
    $region5: #{tpu_custom_call.1} parent=1 // loop_body
      %s35 = ssub.s32 %s30, 1
      %s36 = ssub.s32 %s30, 2
      %s46 = sadd.s32 1, %s39
      %p47 = scmp.ge.s32.totalorder %s46, 4
      %s48 = scalar_select %p47, 0, %s46
      %s49 = sadd.s32 1, %s38
      %s50 = scalar_select %p47, %s49, %s38
      %p51 = scmp.ge.s32.totalorder %s50, 1
      %s52 = scalar_select %p51, 0, %s50
      %s53 = sadd.s32 1, %s37
      %s54 = scalar_select %p51, %s53, %s37
      %p55 = scmp.ge.s32.totalorder %s54, 2
      %s56 = scalar_select %p55, 0, %s54
      %s57 = ssub.s32 %s37, %s56
      %s58 = ssub.s32 %s39, %s48
      %s59 = sor.u32 %s57, %s58
      %s60 = ssub.s32 %s38, %s52
      %s61 = sor.u32 %s59, %s60
      %p62 = scmp.eq.s32.totalorder %s61, 0
      %s64 = sadd.s32 %s63, 1
      %s65 = scalar_select %p62, %s63, %s64
      %p68 = pneg %p62
      %p69 = scmp.eq.s32.totalorder %s30, 7
      %p70 = por %p68, %p69
      %p71 = scmp.ne.s32.totalorder %s63, %s66
      %p72 = scmp.eq.s32.totalorder %s30, 0
      %p73 = por %p71, %p72
      %p74 = scmp.ne.s32.totalorder %s63, %s66
      %p75 = scmp.eq.s32.totalorder %s35, 7
      %p76 = por %p74, %p75
      %p77 = scmp.ne.s32.totalorder %s66, %s67
      %p78 = scmp.eq.s32.totalorder %s35, 0
      %p79 = por %p77, %p78
      %p80 = scmp.ne.s32.totalorder %s66, %s67
      %p81 = scmp.eq.s32.totalorder %s36, 7
      %p82 = por %p80, %p81
      %p84 = scmp.ne.s32.totalorder %s67, %s83
      %p85 = scmp.eq.s32.totalorder %s36, 0
      %p86 = por %p84, %p85
      %s87 = ssub.s32 %s37, %s56
      %s88 = ssub.s32 %s39, %s48
      %s89 = sor.u32 %s87, %s88
      %p90 = scmp.eq.s32.totalorder %s89, 0
      %s92 = sadd.s32 %s91, 1
      %s93 = scalar_select %p90, %s91, %s92
      %p96 = pneg %p90
      %p97 = scmp.eq.s32.totalorder %s30, 7
      %p98 = por %p96, %p97
      %p99 = scmp.ne.s32.totalorder %s91, %s94
      %p100 = scmp.eq.s32.totalorder %s30, 0
      %p101 = por %p99, %p100
      %p102 = scmp.ne.s32.totalorder %s91, %s94
      %p103 = scmp.eq.s32.totalorder %s35, 7
      %p104 = por %p102, %p103
      %p105 = scmp.ne.s32.totalorder %s94, %s95
      %p106 = scmp.eq.s32.totalorder %s35, 0
      %p107 = por %p105, %p106
      %p108 = scmp.ne.s32.totalorder %s94, %s95
      %p109 = scmp.eq.s32.totalorder %s36, 7
      %p110 = por %p108, %p109
      %p112 = scmp.ne.s32.totalorder %s95, %s111
      %p113 = scmp.eq.s32.totalorder %s36, 0
      %p114 = por %p112, %p113
      %s115 = ssub.s32 %s37, %s56
      %s116 = ssub.s32 %s39, %s48
      %s117 = sor.u32 %s115, %s116
      %p118 = scmp.eq.s32.totalorder %s117, 0
      %s120 = sadd.s32 %s119, 1
      %s121 = scalar_select %p118, %s119, %s120
      %p124 = pneg %p118
      %p125 = scmp.eq.s32.totalorder %s30, 7
      %p126 = por %p124, %p125
      %p127 = scmp.ne.s32.totalorder %s119, %s122
      %p128 = scmp.eq.s32.totalorder %s30, 0
      %p129 = por %p127, %p128
      %p130 = scmp.ne.s32.totalorder %s119, %s122
      %p131 = scmp.eq.s32.totalorder %s35, 7
      %p132 = por %p130, %p131
      %p133 = scmp.ne.s32.totalorder %s122, %s123
      %p134 = scmp.eq.s32.totalorder %s35, 0
      %p135 = por %p133, %p134
      %p136 = scmp.ne.s32.totalorder %s122, %s123
      %p137 = scmp.eq.s32.totalorder %s36, 7
      %p138 = por %p136, %p137
      %p140 = scmp.ne.s32.totalorder %s123, %s139
      %p141 = scmp.eq.s32.totalorder %s36, 0
      %p142 = por %p140, %p141
      %s143 = ssub.s32 %s37, %s56
      %s144 = ssub.s32 %s38, %s52
      %s145 = sor.u32 %s143, %s144
      %p146 = scmp.eq.s32.totalorder %s145, 0
      %s148 = sadd.s32 %s147, 1
      %s149 = scalar_select %p146, %s147, %s148
      %p152 = pneg %p146
      %p153 = scmp.eq.s32.totalorder %s30, 7
      %p154 = por %p152, %p153
      %p155 = scmp.ne.s32.totalorder %s147, %s150
      %p156 = scmp.eq.s32.totalorder %s30, 0
      %p157 = por %p155, %p156
      %p158 = scmp.ne.s32.totalorder %s147, %s150
      %p159 = scmp.eq.s32.totalorder %s35, 7
      %p160 = por %p158, %p159
      %p161 = scmp.ne.s32.totalorder %s150, %s151
      %p162 = scmp.eq.s32.totalorder %s35, 0
      %p163 = por %p161, %p162
      %p164 = scmp.ne.s32.totalorder %s150, %s151
      %p165 = scmp.eq.s32.totalorder %s36, 7
      %p166 = por %p164, %p165
      %p168 = scmp.ne.s32.totalorder %s151, %s167
      %p169 = scmp.eq.s32.totalorder %s36, 0
      %p170 = por %p168, %p169
      %s171 = ssub.s32 %s37, %s56
      %s172 = ssub.s32 %s38, %s52
      %s173 = sor.u32 %s171, %s172
      %p174 = scmp.eq.s32.totalorder %s173, 0
      %s176 = sadd.s32 %s175, 1
      %s177 = scalar_select %p174, %s175, %s176
      %p180 = pneg %p174
      %p181 = scmp.eq.s32.totalorder %s30, 7
      %p182 = por %p180, %p181
      %p183 = scmp.ne.s32.totalorder %s175, %s178
      %p184 = scmp.eq.s32.totalorder %s30, 0
      %p185 = por %p183, %p184
      %p186 = scmp.ne.s32.totalorder %s175, %s178
      %p187 = scmp.eq.s32.totalorder %s35, 7
      %p188 = por %p186, %p187
      %p189 = scmp.ne.s32.totalorder %s178, %s179
      %p190 = scmp.eq.s32.totalorder %s35, 0
      %p191 = por %p189, %p190
      %p192 = scmp.ne.s32.totalorder %s178, %s179
      %p193 = scmp.eq.s32.totalorder %s36, 7
      %p194 = por %p192, %p193
      %p196 = scmp.ne.s32.totalorder %s179, %s195
      %p197 = scmp.eq.s32.totalorder %s36, 0
      %p198 = por %p196, %p197
      %s200 = sadd.s32 %s199, 1
      %p203 = scmp.eq.s32.totalorder %s30, 7
      %p204 = scmp.ne.s32.totalorder %s199, %s201
      %p205 = scmp.eq.s32.totalorder %s30, 0
      %p206 = por %p204, %p205
      %p207 = scmp.ne.s32.totalorder %s199, %s201
      %p208 = scmp.eq.s32.totalorder %s35, 7
      %p209 = por %p207, %p208
      %p210 = scmp.ne.s32.totalorder %s201, %s202
      %p211 = scmp.eq.s32.totalorder %s35, 0
      %p212 = por %p210, %p211
      %p213 = scmp.ne.s32.totalorder %s201, %s202
      %p214 = scmp.eq.s32.totalorder %s36, 7
      %p215 = por %p213, %p214
      %p217 = scmp.ne.s32.totalorder %s202, %s216
      %p218 = scmp.eq.s32.totalorder %s36, 0
      %p219 = por %p217, %p218
      %s221 = sadd.s32 %s220, 1
      %p224 = scmp.eq.s32.totalorder %s30, 7
      %p225 = scmp.ne.s32.totalorder %s220, %s222
      %p226 = scmp.eq.s32.totalorder %s30, 0
      %p227 = por %p225, %p226
      %p228 = scmp.ne.s32.totalorder %s220, %s222
      %p229 = scmp.eq.s32.totalorder %s35, 7
      %p230 = por %p228, %p229
      %p231 = scmp.ne.s32.totalorder %s222, %s223
      %p232 = scmp.eq.s32.totalorder %s35, 0
      %p233 = por %p231, %p232
      %p234 = scmp.ne.s32.totalorder %s222, %s223
      %p235 = scmp.eq.s32.totalorder %s36, 7
      %p236 = por %p234, %p235
      %p238 = scmp.ne.s32.totalorder %s223, %s237
      %p239 = scmp.eq.s32.totalorder %s36, 0
      %p240 = por %p238, %p239
      %s241 = ssub.s32 %s37, %s56
      %s242 = ssub.s32 %s38, %s52
      %s243 = sor.u32 %s241, %s242
      %p244 = scmp.eq.s32.totalorder %s243, 0
      %s246 = sadd.s32 %s245, 1
      %s247 = scalar_select %p244, %s245, %s246
      %p250 = pneg %p244
      %p251 = scmp.eq.s32.totalorder %s30, 7
      %p252 = por %p250, %p251
      %p253 = scmp.ne.s32.totalorder %s245, %s248
      %p254 = scmp.eq.s32.totalorder %s30, 0
      %p255 = por %p253, %p254
      %p256 = scmp.ne.s32.totalorder %s245, %s248
      %p257 = scmp.eq.s32.totalorder %s35, 7
      %p258 = por %p256, %p257
      %p259 = scmp.ne.s32.totalorder %s248, %s249
      %p260 = scmp.eq.s32.totalorder %s35, 0
      %p261 = por %p259, %p260
      %p262 = scmp.ne.s32.totalorder %s248, %s249
      %p263 = scmp.eq.s32.totalorder %s36, 7
      %p264 = por %p262, %p263
      %p266 = scmp.ne.s32.totalorder %s249, %s265
      %p267 = scmp.eq.s32.totalorder %s36, 0
      %p268 = por %p266, %p267
      %s269 = ssub.s32 %s37, %s56
      %s270 = ssub.s32 %s39, %s48
      %s271 = sor.u32 %s269, %s270
      %s272 = ssub.s32 %s38, %s52
      %s273 = sor.u32 %s271, %s272
      %p274 = scmp.eq.s32.totalorder %s273, 0
      %s276 = sadd.s32 %s275, 1
      %s277 = scalar_select %p274, %s275, %s276
      %p280 = pneg %p274
      %p281 = scmp.eq.s32.totalorder %s30, 7
      %p282 = por %p280, %p281
      %p283 = scmp.ne.s32.totalorder %s275, %s278
      %p284 = scmp.eq.s32.totalorder %s30, 0
      %p285 = por %p283, %p284
      %p286 = scmp.ne.s32.totalorder %s275, %s278
      %p287 = scmp.eq.s32.totalorder %s35, 7
      %p288 = por %p286, %p287
      %p289 = scmp.ne.s32.totalorder %s278, %s279
      %p290 = scmp.eq.s32.totalorder %s35, 0
      %p291 = por %p289, %p290
      %p292 = scmp.ne.s32.totalorder %s278, %s279
      %p293 = scmp.eq.s32.totalorder %s36, 7
      %p294 = por %p292, %p293
      %p296 = scmp.ne.s32.totalorder %s279, %s295
      %p297 = scmp.eq.s32.totalorder %s36, 0
      %p298 = por %p296, %p297
      %p299 = scmp.le.s32.totalorder 1, %s30
      %p300 = scmp.lt.s32.totalorder %s30, 9
      %p301 = pnand %p299, %p300
      %p302 = pneg %p301
      // Predicated region
      $region9: #{tpu_custom_call.1} parent=5 // pred_check
        _
      $region10: #{tpu_custom_call.1} parent=5 // pred_check_branch
        %304 = sbr.rel (%p301) target = $region12
      $region11: #{tpu_custom_call.1} parent=5 // pred_region
        %s305 = ssub.s32 %s30, 1
        // Predicated region
        $region13: #{tpu_custom_call.1} parent=11 // pred_check
          %p306 = pneg %p212
        $region14: #{tpu_custom_call.1} parent=11 // pred_check_branch
          %308 = sbr.rel (%p306) target = $region16
        $region15: #{tpu_custom_call.1} parent=11 // pred_region
          _
        $region16: #{tpu_custom_call.1} parent=11 // pred_fallthru
          _
        // Predicated region
        $region17: #{tpu_custom_call.1} parent=11 // pred_check
          %p309 = pneg %p233
        $region18: #{tpu_custom_call.1} parent=11 // pred_check_branch
          %311 = sbr.rel (%p309) target = $region20
        $region19: #{tpu_custom_call.1} parent=11 // pred_region
          _
        $region20: #{tpu_custom_call.1} parent=11 // pred_fallthru
          _
      $region12: #{tpu_custom_call.1} parent=5 // pred_fallthru
        _
      %p312 = scmp.lt.s32.totalorder %s30, 8
      // Predicated region
      $region21: #{tpu_custom_call.1} parent=5 // pred_check
        %p313 = pneg %p312
      $region22: #{tpu_custom_call.1} parent=5 // pred_check_branch
        %315 = sbr.rel (%p313) target = $region24
      $region23: #{tpu_custom_call.1} parent=5 // pred_region
        // Predicated region
        $region25: #{tpu_custom_call.1} parent=23 // pred_check
          %p316 = pneg %p73
        $region26: #{tpu_custom_call.1} parent=23 // pred_check_branch
          %318 = sbr.rel (%p316) target = $region28
        $region27: #{tpu_custom_call.1} parent=23 // pred_region
          %s319 = sand.u32 %s63, 1
          %s320 = scalar_lea.sflag [#allocation4], %s319
          %s321 = sand.u32 %s63, 1
          %s322 = smul.addr %s321, 8
          %s323 = scalar_lea.vmem [#allocation3], %s322
          %325 = vsyncadd %s320, 0
          %s326 = sadd.s32 %s38, %s39
          %s327 = smul.addr %s37, 4
          %s328 = sadd.s32 %s326, %s327
          %s329 = smul.addr %s328, 8
          %s330 = scalar_lea.hbm %s0, %s329
          %s332 = sshll.u32 %s330, 4
          %s333 = int_to_ptr.hbm [resolvable:$true] %s332
          %s334 = sshll.u32 %s323, 4
          %s335 = int_to_ptr.vmem [resolvable:$true] %s334
          %337 = dma.hbm_to_vmem [thread:$0]  %s333, 128, %s335, %s320
        $region28: #{tpu_custom_call.1} parent=23 // pred_fallthru
          _
        // Predicated region
        $region29: #{tpu_custom_call.1} parent=23 // pred_check
          %p338 = pneg %p101
        $region30: #{tpu_custom_call.1} parent=23 // pred_check_branch
          %340 = sbr.rel (%p338) target = $region32
        $region31: #{tpu_custom_call.1} parent=23 // pred_region
          %s341 = sand.u32 %s30, 1
          %s342 = scalar_lea.sflag [#allocation7], %s341
          %s343 = sand.u32 %s91, 1
          %s344 = smul.addr %s343, 8
          %s345 = scalar_lea.vmem [#allocation6], %s344
          %347 = vsyncadd %s342, 0
          %s348 = smul.addr %s37, 4
          %s349 = sadd.s32 %s39, %s348
          %s350 = smul.addr %s349, 8
          %s351 = scalar_lea.hbm %s1, %s350
          %s353 = sshll.u32 %s351, 4
          %s354 = int_to_ptr.hbm [resolvable:$true] %s353
          %s355 = sshll.u32 %s345, 4
          %s356 = int_to_ptr.vmem [resolvable:$true] %s355
          %358 = dma.hbm_to_vmem [thread:$0]  %s354, 128, %s356, %s342
        $region32: #{tpu_custom_call.1} parent=23 // pred_fallthru
          _
        // Predicated region
        $region33: #{tpu_custom_call.1} parent=23 // pred_check
          %p359 = pneg %p129
        $region34: #{tpu_custom_call.1} parent=23 // pred_check_branch
          %361 = sbr.rel (%p359) target = $region36
        $region35: #{tpu_custom_call.1} parent=23 // pred_region
          %s362 = sand.u32 %s30, 1
          %s363 = scalar_lea.sflag [#allocation7], %s362
          %s364 = sand.u32 %s119, 1
          %s365 = smul.addr %s364, 8
          %s366 = scalar_lea.vmem [#allocation8], %s365
          %368 = vsyncadd %s363, 0
          %s369 = smul.addr %s37, 4
          %s370 = sadd.s32 %s39, %s369
          %s371 = smul.addr %s370, 8
          %s372 = scalar_lea.hbm %s2, %s371
          %s374 = sshll.u32 %s372, 4
          %s375 = int_to_ptr.hbm [resolvable:$true] %s374
          %s376 = sshll.u32 %s366, 4
          %s377 = int_to_ptr.vmem [resolvable:$true] %s376
          %379 = dma.hbm_to_vmem [thread:$0]  %s375, 128, %s377, %s363
        $region36: #{tpu_custom_call.1} parent=23 // pred_fallthru
          _
        // Predicated region
        $region37: #{tpu_custom_call.1} parent=23 // pred_check
          %p380 = pneg %p157
        $region38: #{tpu_custom_call.1} parent=23 // pred_check_branch
          %382 = sbr.rel (%p380) target = $region40
        $region39: #{tpu_custom_call.1} parent=23 // pred_region
          %s383 = sand.u32 %s30, 1
          %s384 = scalar_lea.sflag [#allocation10], %s383
          %s385 = sand.u32 %s147, 1
          %s386 = smul.addr %s385, 8
          %s387 = scalar_lea.vmem [#allocation9], %s386
          %389 = vsyncadd %s384, 0
          %s390 = sadd.s32 %s38, %s37
          %s391 = smul.addr %s390, 8
          %s392 = scalar_lea.hbm %s3, %s391
          %s394 = sshll.u32 %s392, 4
          %s395 = int_to_ptr.hbm [resolvable:$true] %s394
          %s396 = sshll.u32 %s387, 4
          %s397 = int_to_ptr.vmem [resolvable:$true] %s396
          %399 = dma.hbm_to_vmem [thread:$0]  %s395, 128, %s397, %s384
        $region40: #{tpu_custom_call.1} parent=23 // pred_fallthru
          _
        // Predicated region
        $region41: #{tpu_custom_call.1} parent=23 // pred_check
          %p400 = pneg %p185
        $region42: #{tpu_custom_call.1} parent=23 // pred_check_branch
          %402 = sbr.rel (%p400) target = $region44
        $region43: #{tpu_custom_call.1} parent=23 // pred_region
          %s403 = sand.u32 %s30, 1
          %s404 = scalar_lea.sflag [#allocation10], %s403
          %s405 = sand.u32 %s175, 1
          %s406 = smul.addr %s405, 8
          %s407 = scalar_lea.vmem [#allocation11], %s406
          %409 = vsyncadd %s404, 0
          %s410 = sadd.s32 %s38, %s37
          %s411 = smul.addr %s410, 8
          %s412 = scalar_lea.hbm %s4, %s411
          %s414 = sshll.u32 %s412, 4
          %s415 = int_to_ptr.hbm [resolvable:$true] %s414
          %s416 = sshll.u32 %s407, 4
          %s417 = int_to_ptr.vmem [resolvable:$true] %s416
          %419 = dma.hbm_to_vmem [thread:$0]  %s415, 128, %s417, %s404
        $region44: #{tpu_custom_call.1} parent=23 // pred_fallthru
          _
      $region24: #{tpu_custom_call.1} parent=5 // pred_fallthru
        _
      %p420 = scmp.le.s32.totalorder 1, %s30
      %p421 = scmp.lt.s32.totalorder %s30, 9
      %p422 = pnand %p420, %p421
      %p423 = pneg %p422
      // Predicated region
      $region45: #{tpu_custom_call.1} parent=5 // pred_check
        _
      $region46: #{tpu_custom_call.1} parent=5 // pred_check_branch
        %425 = sbr.rel (%p422) target = $region48
      $region47: #{tpu_custom_call.1} parent=5 // pred_region
        %s426 = ssub.s32 %s30, 1
        %s427 = sand.u32 %s66, 1
        %s428 = scalar_lea.sflag [#allocation4], %s427
        %s429 = sand.u32 %s66, 1
        %s430 = smul.addr %s429, 8
        %s431 = scalar_lea.vmem [#allocation3], %s430
        // Predicated region
        $region49: #{tpu_custom_call.1} parent=47 // pred_check
          %p432 = pneg %p79
        $region50: #{tpu_custom_call.1} parent=47 // pred_check_branch
          %434 = sbr.rel (%p432) target = $region52
        $region51: #{tpu_custom_call.1} parent=47 // pred_region
          %436 = dma.done %s428, 128
        $region52: #{tpu_custom_call.1} parent=47 // pred_fallthru
          _
        %s437 = sand.u32 %s35, 1
        %s438 = scalar_lea.sflag [#allocation7], %s437
        %s439 = sand.u32 %s94, 1
        %s440 = smul.addr %s439, 8
        %s441 = scalar_lea.vmem [#allocation6], %s440
        // Predicated region
        $region53: #{tpu_custom_call.1} parent=47 // pred_check
          %p442 = pneg %p107
        $region54: #{tpu_custom_call.1} parent=47 // pred_check_branch
          %444 = sbr.rel (%p442) target = $region56
        $region55: #{tpu_custom_call.1} parent=47 // pred_region
          %446 = dma.done %s438, 128
        $region56: #{tpu_custom_call.1} parent=47 // pred_fallthru
          _
        %s447 = sand.u32 %s35, 1
        %s448 = scalar_lea.sflag [#allocation7], %s447
        %s449 = sand.u32 %s122, 1
        %s450 = smul.addr %s449, 8
        %s451 = scalar_lea.vmem [#allocation8], %s450
        // Predicated region
        $region57: #{tpu_custom_call.1} parent=47 // pred_check
          %p452 = pneg %p135
        $region58: #{tpu_custom_call.1} parent=47 // pred_check_branch
          %454 = sbr.rel (%p452) target = $region60
        $region59: #{tpu_custom_call.1} parent=47 // pred_region
          %456 = dma.done %s448, 128
        $region60: #{tpu_custom_call.1} parent=47 // pred_fallthru
          _
        %s457 = sand.u32 %s35, 1
        %s458 = scalar_lea.sflag [#allocation10], %s457
        %s459 = sand.u32 %s150, 1
        %s460 = smul.addr %s459, 8
        %s461 = scalar_lea.vmem [#allocation9], %s460
        // Predicated region
        $region61: #{tpu_custom_call.1} parent=47 // pred_check
          %p462 = pneg %p163
        $region62: #{tpu_custom_call.1} parent=47 // pred_check_branch
          %464 = sbr.rel (%p462) target = $region64
        $region63: #{tpu_custom_call.1} parent=47 // pred_region
          %466 = dma.done %s458, 128
        $region64: #{tpu_custom_call.1} parent=47 // pred_fallthru
          _
        %s467 = sand.u32 %s35, 1
        %s468 = scalar_lea.sflag [#allocation10], %s467
        %s469 = sand.u32 %s178, 1
        %s470 = smul.addr %s469, 8
        %s471 = scalar_lea.vmem [#allocation11], %s470
        // Predicated region
        $region65: #{tpu_custom_call.1} parent=47 // pred_check
          %p472 = pneg %p191
        $region66: #{tpu_custom_call.1} parent=47 // pred_check_branch
          %474 = sbr.rel (%p472) target = $region68
        $region67: #{tpu_custom_call.1} parent=47 // pred_region
          %476 = dma.done %s468, 128
        $region68: #{tpu_custom_call.1} parent=47 // pred_fallthru
          _
        %s477 = sand.u32 %s66, 1
        %s478 = scalar_lea.sflag [#allocation4], %s477
        %s479 = sand.u32 %s66, 1
        %s480 = smul.addr %s479, 8
        %s481 = scalar_lea.vmem [#allocation3], %s480
        %p482 = pneg %p79
        %p483 = pneg %p76
        %s484 = sand.u32 %s35, 1
        %s485 = scalar_lea.sflag [#allocation7], %s484
        %s486 = sand.u32 %s94, 1
        %s487 = smul.addr %s486, 8
        %s488 = scalar_lea.vmem [#allocation6], %s487
        %p489 = pneg %p107
        %p490 = pneg %p104
        %s491 = sand.u32 %s35, 1
        %s492 = scalar_lea.sflag [#allocation7], %s491
        %s493 = sand.u32 %s122, 1
        %s494 = smul.addr %s493, 8
        %s495 = scalar_lea.vmem [#allocation8], %s494
        %p496 = pneg %p135
        %p497 = pneg %p132
        %s498 = sand.u32 %s35, 1
        %s499 = scalar_lea.sflag [#allocation10], %s498
        %s500 = sand.u32 %s150, 1
        %s501 = smul.addr %s500, 8
        %s502 = scalar_lea.vmem [#allocation9], %s501
        %p503 = pneg %p163
        %p504 = pneg %p160
        %s505 = sand.u32 %s35, 1
        %s506 = scalar_lea.sflag [#allocation10], %s505
        %s507 = sand.u32 %s178, 1
        %s508 = smul.addr %s507, 8
        %s509 = scalar_lea.vmem [#allocation11], %s508
        %p510 = pneg %p191
        %p511 = pneg %p188
        %p512 = pneg %p212
        %p513 = pneg %p209
        %p514 = pneg %p233
        %p515 = pneg %p230
        %p516 = pneg %p261
        %p517 = pneg %p258
        %s518 = sand.u32 %s248, 1
        %s519 = scalar_lea.sflag [#allocation5], %s518
        %s520 = sand.u32 %s248, 1
        %s521 = smul.addr %s520, 8
        %s522 = scalar_lea.vmem [#allocation12], %s521
        %p523 = pneg %p291
        %p524 = pneg %p288
        %s525 = sand.u32 %s278, 1
        %s526 = scalar_lea.sflag [#allocation14], %s525
        %s527 = sand.u32 %s278, 1
        %s528 = smul.addr %s527, 8
        %s529 = scalar_lea.vmem [#allocation13], %s528
        %p530 = scmp.eq.s32.totalorder %s42, 0
        // Predicated region
        $region69: #{tpu_custom_call.1} parent=47 // pred_check
          %p531 = pneg %p530
        $region70: #{tpu_custom_call.1} parent=47 // pred_check_branch
          %533 = sbr.rel (%p531) target = $region72
        $region71: #{tpu_custom_call.1} parent=47 // pred_region
          %v534 = vld [vmem:[%s461] sm:$0xff]
          %vm535 = vcmask 261120
          %536 = vst.msk [vmem:[#allocation2] sm:$0xff] %vm535, %v534
        $region72: #{tpu_custom_call.1} parent=47 // pred_fallthru
          _
        %v537 = vld [vmem:[%s431] sm:$0xff]
        %v538 = vld [vmem:[%s441] sm:$0xff]
        %vm539 = vcmask 64512
        %v541 = vsel %vm539, %v537, 0
        %543 = vmatpush.msra.mxu0 0.0
        %544 = vmatpush.msra.mxu0 0.0
        %545 = vmatpush.msra.mxu0 0.0
        %546 = vmatpush.msra.mxu0 0.0
        %547 = vmatpush.msra.mxu0 0.0
        %548 = vmatpush.msra.mxu0 0.0
        %549 = vmatpush.msra.mxu0 0.0
        %550 = vmatpush.msra.mxu0 0.0
        %551 = vmatpush.msra.mxu0 0.0
        %552 = vmatpush.msra.mxu0 0.0
        %553 = vmatpush.msra.mxu0 0.0
        %554 = vmatpush.msra.mxu0 0.0
        %555 = vmatpush.msra.mxu0 0.0
        %556 = vmatpush.msra.mxu0 0.0
        %557 = vmatpush.msra.mxu0 0.0
        %558 = vmatpush.msra.mxu0 %v538
        %559 = vmatmul.f32.gmra.mxu0 %v541
        %v560 = vpop.f32.mrf.mxu0
        %v561 = vadd.f32 0.0, %v560
        %562 = vdwg.mxu0
        %v563 = vmul.f32 %v561, 0.35355338
        %v564 = vsel %vm539, %v563, -inf
        %565 = vmax.xlane.f32.xlu0 %v564
        %v566 = vpop.xlane.xlu0 %565
        %v567 = vsub.f32 %v563, %v566
        %v568 = vmul.f32 %v567, 1.442695
        %v569 = vpow.pop %v568
        %v570 = vsel %vm539, %v569, 0.0
        %571 = vadd.xlane.f32.xlu0 %v570
        %v572 = vpop.xlane.xlu0 %571
        %v573 = vrcp.pop %v572
        %v574 = vmul.f32 %v572, %v573
        %v575 = vsub.f32 1.0, %v574
        %v576 = vmul.f32 %v573, %v575
        %v577 = vadd.f32 %v573, %v576
        %vm578 = vweird.f32 %v572
        %vm579 = vweird.f32 %v573
        %vm580 = vmor %vm578, %vm579
        %v581 = vsel %vm580, %v573, %v577
        %v582 = vand.u32 2147483647, %v572
        %vm583 = vcmp.eq.f32.partialorder %v582, 8.507059e+37
        %v584 = vand.u32 %v572, 2147483648
        %v585 = vor.u32 1.1754944e-38, %v584
        %v586 = vsel %vm583, %v585, %v581
        %v587 = vmul.f32 %v569, %v586
        %588 = vst.msk [vmem:[%s529] sm:$0xff] %vm539, %v587
        %v589 = vld [vmem:[#allocation2] sm:$0xff]
        %v590 = vld [vmem:[%s451] sm:$0xff]
        %v592 = vsel %vm539, %v587, 0
        %594 = vmatpush.msra.mxu0 0.0
        %595 = vmatpush.msra.mxu0 0.0
        %596 = vmatpush.msra.mxu0 0.0
        %597 = vmatpush.msra.mxu0 0.0
        %598 = vmatpush.msra.mxu0 0.0
        %599 = vmatpush.msra.mxu0 0.0
        %600 = vmatpush.msra.mxu0 0.0
        %601 = vmatpush.msra.mxu0 0.0
        %602 = vmatpush.msra.mxu0 0.0
        %603 = vmatpush.msra.mxu0 0.0
        %604 = vmatpush.msra.mxu0 0.0
        %605 = vmatpush.msra.mxu0 0.0
        %606 = vmatpush.msra.mxu0 0.0
        %607 = vmatpush.msra.mxu0 0.0
        %608 = vmatpush.msra.mxu0 0.0
        %609 = vmatpush.msra.mxu0 %v590
        %610 = vmatmul.f32.gmra.mxu0 %v592
        %v611 = vpop.f32.mrf.mxu0
        %v612 = vadd.f32 0.0, %v611
        %613 = vdwg.mxu0
        %v614 = vadd.f32 %v589, %v612
        %vm615 = vcmask 261120
        %616 = vst.msk [vmem:[#allocation2] sm:$0xff] %vm615, %v614
        %p617 = scmp.eq.s32.totalorder %s42, 3
        // Predicated region
        $region73: #{tpu_custom_call.1} parent=47 // pred_check
          %p618 = pneg %p617
        $region74: #{tpu_custom_call.1} parent=47 // pred_check_branch
          %620 = sbr.rel (%p618) target = $region76
        $region75: #{tpu_custom_call.1} parent=47 // pred_region
          %v621 = vld [vmem:[#allocation2] sm:$0xff]
          %v622 = vmax.f32 %v621, 0.0
          %v623 = vld [vmem:[%s471] sm:$0xff]
          %v624 = vadd.f32 %v622, %v623
          %v625 = vsel %vm615, %v624, 0.0
          %626 = vadd.xlane.f32.xlu0 %v625
          %v627 = vpop.xlane.xlu0 %626
          %v628 = vrcp.pop 32.0
          %v629 = vmul.f32 32.0, %v628
          %v630 = vsub.f32 1.0, %v629
          %v631 = vmul.f32 %v628, %v630
          %v632 = vadd.f32 %v628, %v631
          %vm633 = vweird.f32 %v628
          %v634 = vsel %vm633, %v628, %v632
          %v635 = vmul.f32 %v627, %v634
          %v636 = vsub.f32 %v624, %v635
          %v637 = vmul.f32 %v636, %v636
          %v638 = vsel %vm615, %v637, 0.0
          %639 = vadd.xlane.f32.xlu0 %v638
          %v640 = vpop.xlane.xlu0 %639
          %v641 = vmul.f32 %v640, %v634
          %v642 = vadd.f32 %v641, 1e-05
          %v643 = vrsqrt.pop %v642
          %v644 = vmul.f32 %v643, %v642
          %v645 = vmul.f32 %v644, %v643
          %v646 = vmul.f32 0.5, %v645
          %v647 = vsub.f32 1.5, %v646
          %v648 = vmul.f32 %v643, %v647
          %vm649 = vweird.f32 %v642
          %vm650 = vweird.f32 %v643
          %vm651 = vmor %vm649, %vm650
          %v652 = vsel %vm651, %v643, %v648
          %v653 = vmul.f32 %v636, %v652
          %v654 = vld [vmem:[%s5] sm:$0x1]
          %v656 = vperm.slane %v654, 0
          %v658 = vmul.f32 %v653, %v656
          %v659 = vld [vmem:[%s6] sm:$0x1]
          %v661 = vperm.slane %v659, 0
          %v663 = vadd.f32 %v658, %v661
          %664 = vst.msk [vmem:[%s522] sm:$0xff] %vm615, %v663
        $region76: #{tpu_custom_call.1} parent=47 // pred_fallthru
          _
        %s665 = sand.u32 %s248, 1
        %s666 = scalar_lea.sflag [#allocation5], %s665
        %s667 = sand.u32 %s248, 1
        %s668 = smul.addr %s667, 8
        %s669 = scalar_lea.vmem [#allocation12], %s668
        %s670 = sand.u32 %s278, 1
        %s671 = scalar_lea.sflag [#allocation14], %s670
        %s672 = sand.u32 %s278, 1
        %s673 = smul.addr %s672, 8
        %s674 = scalar_lea.vmem [#allocation13], %s673
        // Predicated region
        $region77: #{tpu_custom_call.1} parent=47 // pred_check
          %p675 = pneg %p258
        $region78: #{tpu_custom_call.1} parent=47 // pred_check_branch
          %677 = sbr.rel (%p675) target = $region80
        $region79: #{tpu_custom_call.1} parent=47 // pred_region
          %679 = vsyncadd %s666, 0
          %s680 = sadd.s32 %s41, %s40
          %s681 = smul.addr %s680, 8
          %s682 = scalar_lea.hbm %s7, %s681
          %s684 = sshll.u32 %s669, 4
          %s685 = int_to_ptr.vmem [resolvable:$true] %s684
          %s686 = sshll.u32 %s682, 4
          %s687 = int_to_ptr.hbm [resolvable:$true] %s686
          %689 = dma.vmem_to_hbm [thread:$0]  %s685, 128, %s687, %s666
        $region80: #{tpu_custom_call.1} parent=47 // pred_fallthru
          _
        // Predicated region
        $region81: #{tpu_custom_call.1} parent=47 // pred_check
          %p690 = pneg %p288
        $region82: #{tpu_custom_call.1} parent=47 // pred_check_branch
          %692 = sbr.rel (%p690) target = $region84
        $region83: #{tpu_custom_call.1} parent=47 // pred_region
          %694 = vsyncadd %s671, 0
          %s695 = sadd.s32 %s41, %s42
          %s696 = smul.addr %s40, 4
          %s697 = sadd.s32 %s695, %s696
          %s698 = smul.addr %s697, 8
          %s699 = scalar_lea.hbm %s8, %s698
          %s701 = sshll.u32 %s674, 4
          %s702 = int_to_ptr.vmem [resolvable:$true] %s701
          %s703 = sshll.u32 %s699, 4
          %s704 = int_to_ptr.hbm [resolvable:$true] %s703
          %706 = dma.vmem_to_hbm [thread:$0]  %s702, 128, %s704, %s671
        $region84: #{tpu_custom_call.1} parent=47 // pred_fallthru
          _
      $region48: #{tpu_custom_call.1} parent=5 // pred_fallthru
        _
      %p707 = scmp.le.s32.totalorder 2, %s30
      // Predicated region
      $region85: #{tpu_custom_call.1} parent=5 // pred_check
        %p708 = pneg %p707
      $region86: #{tpu_custom_call.1} parent=5 // pred_check_branch
        %710 = sbr.rel (%p708) target = $region88
      $region87: #{tpu_custom_call.1} parent=5 // pred_region
        %s711 = ssub.s32 %s30, 2
        // Predicated region
        $region89: #{tpu_custom_call.1} parent=87 // pred_check
          %p712 = pneg %p264
        $region90: #{tpu_custom_call.1} parent=87 // pred_check_branch
          %714 = sbr.rel (%p712) target = $region92
        $region91: #{tpu_custom_call.1} parent=87 // pred_region
          %s715 = sand.u32 %s249, 1
          %s716 = scalar_lea.sflag [#allocation5], %s715
          %s717 = sand.u32 %s249, 1
          %s718 = smul.addr %s717, 8
          %s719 = scalar_lea.vmem [#allocation12], %s718
          %721 = dma.done %s716, 128
        $region92: #{tpu_custom_call.1} parent=87 // pred_fallthru
          _
        // Predicated region
        $region93: #{tpu_custom_call.1} parent=87 // pred_check
          %p722 = pneg %p294
        $region94: #{tpu_custom_call.1} parent=87 // pred_check_branch
          %724 = sbr.rel (%p722) target = $region96
        $region95: #{tpu_custom_call.1} parent=87 // pred_region
          %s725 = sand.u32 %s279, 1
          %s726 = scalar_lea.sflag [#allocation14], %s725
          %s727 = sand.u32 %s279, 1
          %s728 = smul.addr %s727, 8
          %s729 = scalar_lea.vmem [#allocation13], %s728
          %731 = dma.done %s726, 128
        $region96: #{tpu_custom_call.1} parent=87 // pred_fallthru
          _
      $region88: #{tpu_custom_call.1} parent=5 // pred_fallthru
        _
    $region6: #{tpu_custom_call.1} parent=1 // loop_footer
      %s34 = sadd.s32 1, %s30
    $region7: #{tpu_custom_call.1} parent=1 // loop_footer_branch
      %29 = sbr.rel target = $region3
    $region8: #{tpu_custom_call.1} parent=1 // loop_exit
      _
    %732 = vsyncpa [#allocation4], 1
    %s733 = scalar_lea.sflag [#allocation4], 1
    %734 = vsyncpa %s733, 1
    %735 = vsyncpa [#allocation7], 1
    %s736 = scalar_lea.sflag [#allocation7], 1
    %737 = vsyncpa %s736, 1
    %738 = vsyncpa [#allocation10], 1
    %s739 = scalar_lea.sflag [#allocation10], 1
    %740 = vsyncpa %s739, 1
    %741 = vsyncpa [#allocation5], 1
    %s742 = scalar_lea.sflag [#allocation5], 1
    %743 = vsyncpa %s742, 1
    %744 = vsyncpa [#allocation14], 1
    %s745 = scalar_lea.sflag [#allocation14], 1
    %746 = vsyncpa %s745, 1

</llo_original>
